<compile_context>
chip_gen: v7x
topology: tpu7x:2x2x1
jax: 0.10.0
libtpu: 0.0.40
codegen_flags: <defaults>
</compile_context>

<pallas_src>
import jax
import jax.numpy as jnp
from jax.experimental import pallas as pl
from jax.experimental.pallas import tpu as pltpu


def _round_up(x, m):
    return (x + m - 1) // m * m


def _generator_kernel(z_ref, w1_ref, b1_ref, w2_ref, b2_ref, w3_ref, b3_ref,
                      out_ref):
    # z arrives as f32; cast to the matmul dtype in-kernel (hidden under MXU).
    z = z_ref[...].astype(w1_ref.dtype)

    # Layer 1: Linear (MXU, f32 accumulation) + bias/ReLU epilogue in bf16.
    h1 = jnp.dot(z, w1_ref[...], preferred_element_type=jnp.float32)
    h1 = jnp.maximum(h1.astype(w2_ref.dtype) + b1_ref[...], 0)

    # Layer 2: Linear + ReLU (same bf16 epilogue).
    h2 = jnp.dot(h1, w2_ref[...], preferred_element_type=jnp.float32)
    h2 = jnp.maximum(h2.astype(w3_ref.dtype) + b2_ref[...], 0)

    # Layer 3: Linear + bias + Tanh in f32 (narrow out_dim -> tiny EUP work).
    h3 = jnp.dot(h2, w3_ref[...], preferred_element_type=jnp.float32)
    out_ref[...] = jnp.tanh(h3 + b3_ref[...]).astype(out_ref.dtype)


def generator_forward(z, params, *, tm=2048, matmul_dtype=jnp.bfloat16):
    """Run the Generator MLP forward pass as a batch-tiled Pallas kernel.

    z: (batch, input_dim) float32
    params (f32, PyTorch-equivalent layout): w1 (in,128), b1 (1,128),
        w2 (128,256), b2 (1,256), w3 (256,out), b3 (1,out)
    Returns (batch, out) float32.
    """
    batch, input_dim = z.shape
    h1_dim = params["w1"].shape[1]          # 128
    h2_dim = params["w2"].shape[1]          # 256
    out_dim = params["w3"].shape[1]

    # Batch tile: large (amortize per-step overhead) but keep >= 2 grid steps
    # for larger batches and cap padding waste for small ones.
    if batch <= 8:
        tm_eff = 8
    else:
        tm_eff = min(tm, _round_up((batch + 1) // 2, 8))
    tm_eff = _round_up(tm_eff, 8)
    padded_batch = _round_up(batch, tm_eff)
    grid = (padded_batch // tm_eff,)

    # z stays f32; only the batch tail is zero-padded (single cheap op).
    zp = z.astype(jnp.float32)
    if padded_batch != batch:
        zp = jnp.pad(zp, ((0, padded_batch - batch), (0, 0)))

    w1 = params["w1"].astype(matmul_dtype)
    b1 = params["b1"].astype(matmul_dtype)
    w2 = params["w2"].astype(matmul_dtype)
    b2 = params["b2"].astype(matmul_dtype)
    w3 = params["w3"].astype(matmul_dtype)
    b3 = params["b3"].astype(jnp.float32)

    # --- cost estimate (advisory) ------------------------------------------
    w_item = jnp.dtype(matmul_dtype).itemsize
    flops = 2 * padded_batch * (input_dim * h1_dim + h1_dim * h2_dim
                                + h2_dim * out_dim)
    bytes_accessed = (
        padded_batch * input_dim * 4                                  # z (f32)
        + (input_dim * h1_dim + h1_dim * h2_dim
           + h2_dim * out_dim) * w_item                               # weights
        + (h1_dim + h2_dim) * w_item + out_dim * 4                    # biases
        + padded_batch * out_dim * 4                                  # out f32
    )
    cost = pl.CostEstimate(flops=flops,
                           transcendentals=padded_batch * out_dim,
                           bytes_accessed=bytes_accessed)

    # --- specs: z/out tiled over batch, weights resident (constant maps) ----
    in_specs = [
        pl.BlockSpec((tm_eff, input_dim), lambda i: (i, 0)),    # z (tiled)
        pl.BlockSpec((input_dim, h1_dim), lambda i: (0, 0)),    # w1 (resident)
        pl.BlockSpec((1, h1_dim), lambda i: (0, 0)),            # b1
        pl.BlockSpec((h1_dim, h2_dim), lambda i: (0, 0)),       # w2
        pl.BlockSpec((1, h2_dim), lambda i: (0, 0)),            # b2
        pl.BlockSpec((h2_dim, out_dim), lambda i: (0, 0)),      # w3
        pl.BlockSpec((1, out_dim), lambda i: (0, 0)),           # b3
    ]
    # Output at the true out_dim width in f32: 8x fewer HBM writeback bytes
    # than a 128-lane-padded f32 block and no post-call lane-slice pass.
    out_spec = pl.BlockSpec((tm_eff, out_dim), lambda i: (i, 0))

    out = pl.pallas_call(
        _generator_kernel,
        out_shape=jax.ShapeDtypeStruct((padded_batch, out_dim), jnp.float32),
        grid=grid,
        in_specs=in_specs,
        out_specs=out_spec,
        compiler_params=pltpu.CompilerParams(
            dimension_semantics=("parallel",)),
        cost_estimate=cost,
    )(zp, w1, b1, w2, b2, w3, b3)

    if padded_batch != batch:
        out = out[:batch]
    return out


def init_generator_params(key, input_dim, output_dim):
    """Deterministic init mimicking PyTorch nn.Linear default
    (uniform(-1/sqrt(fan_in), 1/sqrt(fan_in)))."""
    dims = [(input_dim, 128), (128, 256), (256, output_dim)]
    params = {}
    for i, (fan_in, fan_out) in enumerate(dims, start=1):
        key, kw, kb = jax.random.split(key, 3)
        bound = 1.0 / jnp.sqrt(jnp.float32(fan_in))
        params[f"w{i}"] = jax.random.uniform(
            kw, (fan_in, fan_out), jnp.float32, -bound, bound)
        params[f"b{i}"] = jax.random.uniform(
            kb, (1, fan_out), jnp.float32, -bound, bound)
    return params


def reference_forward(z, params):
    h1 = jnp.maximum(z @ params["w1"] + params["b1"], 0.0)
    h2 = jnp.maximum(h1 @ params["w2"] + params["b2"], 0.0)
    return jnp.tanh(h2 @ params["w3"] + params["b3"])


if __name__ == "__main__":
    key = jax.random.PRNGKey(0)
    key_p, key_z1, key_z2 = jax.random.split(key, 3)

    input_dim = 32   # latent dim
    output_dim = 16  # generated feature dim
    params = init_generator_params(key_p, input_dim, output_dim)

    # Case 1: small batch (single grid step, tile clamped to 8 rows).
    z1 = jax.random.normal(key_z1, (8, input_dim), jnp.float32)
    out1 = jax.block_until_ready(generator_forward(z1, params))
    ref1 = jax.block_until_ready(reference_forward(z1, params))
    assert out1.shape == (8, output_dim)
    assert out1.dtype == jnp.float32
    assert jnp.allclose(out1, ref1, atol=3e-2, rtol=0.0), float(
        jnp.max(jnp.abs(out1 - ref1)))

    # Case 2: batch not divisible by the tile -> multi-step grid + tail pad
    # (300 rows -> tile 152, 2 grid steps over a 304-row padded batch).
    z2 = jax.random.normal(key_z2, (300, input_dim), jnp.float32)
    out2 = jax.block_until_ready(generator_forward(z2, params))
    ref2 = jax.block_until_ready(reference_forward(z2, params))
    assert out2.shape == (300, output_dim)
    assert jnp.allclose(out2, ref2, atol=3e-2, rtol=0.0), float(
        jnp.max(jnp.abs(out2 - ref2)))

    print("KERNEL_OK")
</pallas_src>

<mosaic_0001>
module attributes {stable_mosaic.version = 11 : i64} {
  func.func @_generator_kernel(%arg0: i32, %arg1: memref<8x32xf32, #tpu.memory_space<vmem>>, %arg2: memref<32x128xbf16, #tpu.memory_space<vmem>>, %arg3: memref<1x128xbf16, #tpu.memory_space<vmem>>, %arg4: memref<128x256xbf16, #tpu.memory_space<vmem>>, %arg5: memref<1x256xbf16, #tpu.memory_space<vmem>>, %arg6: memref<256x16xbf16, #tpu.memory_space<vmem>>, %arg7: memref<1x16xf32, #tpu.memory_space<vmem>>, %arg8: memref<8x16xf32, #tpu.memory_space<vmem>>) attributes {dimension_semantics = [#tpu.dimension_semantics<parallel>], iteration_bounds = array<i64: 1>, scalar_prefetch = 0 : i64, scratch_operands = 0 : i64, tpu.core_type = #tpu.core_type<tc>, window_params = [{transform_indices = @transform_0, window_bounds = array<i64: 8, 32>}, {pipeline_mode = #tpu.pipeline_mode<synchronous>, transform_indices = @transform_1, window_bounds = array<i64: 32, 128>}, {pipeline_mode = #tpu.pipeline_mode<synchronous>, transform_indices = @transform_2, window_bounds = array<i64: 1, 128>}, {pipeline_mode = #tpu.pipeline_mode<synchronous>, transform_indices = @transform_3, window_bounds = array<i64: 128, 256>}, {pipeline_mode = #tpu.pipeline_mode<synchronous>, transform_indices = @transform_4, window_bounds = array<i64: 1, 256>}, {pipeline_mode = #tpu.pipeline_mode<synchronous>, transform_indices = @transform_5, window_bounds = array<i64: 256, 16>}, {pipeline_mode = #tpu.pipeline_mode<synchronous>, transform_indices = @transform_6, window_bounds = array<i64: 1, 16>}, {transform_indices = @transform_7, window_bounds = array<i64: 8, 16>}]} {
    %c0 = arith.constant 0 : index
    %c0_0 = arith.constant 0 : index
    %0 = vector.load %arg1[%c0, %c0_0] : memref<8x32xf32, #tpu.memory_space<vmem>>, vector<8x32xf32>
    %1 = arith.truncf %0 : vector<8x32xf32> to vector<8x32xbf16>
    %c0_1 = arith.constant 0 : index
    %c0_2 = arith.constant 0 : index
    %2 = vector.load %arg2[%c0_1, %c0_2] : memref<32x128xbf16, #tpu.memory_space<vmem>>, vector<32x128xbf16>
    %cst = arith.constant dense<0.000000e+00> : vector<8x128xf32>
    %3 = tpu.matmul %1, %2, %cst {dimension_numbers = #tpu.dot_dimension_numbers<[1], [0], [0], [1], [0, 0, 1, 1], [], []>} : vector<8x32xbf16>, vector<32x128xbf16>, vector<8x128xf32> -> vector<8x128xf32>
    %4 = arith.truncf %3 : vector<8x128xf32> to vector<8x128xbf16>
    %c0_3 = arith.constant 0 : index
    %c0_4 = arith.constant 0 : index
    %5 = vector.load %arg3[%c0_3, %c0_4] : memref<1x128xbf16, #tpu.memory_space<vmem>>, vector<1x128xbf16>
    %6 = vector.broadcast %5 : vector<1x128xbf16> to vector<8x128xbf16>
    %7 = arith.addf %4, %6 : vector<8x128xbf16>
    %cst_5 = arith.constant 0.000000e+00 : bf16
    %8 = vector.broadcast %cst_5 : bf16 to vector<8x128xbf16>
    %9 = arith.maximumf %7, %8 : vector<8x128xbf16>
    %c0_6 = arith.constant 0 : index
    %c0_7 = arith.constant 0 : index
    %10 = vector.load %arg4[%c0_6, %c0_7] : memref<128x256xbf16, #tpu.memory_space<vmem>>, vector<128x256xbf16>
    %cst_8 = arith.constant dense<0.000000e+00> : vector<8x256xf32>
    %11 = tpu.matmul %9, %10, %cst_8 {dimension_numbers = #tpu.dot_dimension_numbers<[1], [0], [0], [1], [0, 0, 1, 1], [], []>} : vector<8x128xbf16>, vector<128x256xbf16>, vector<8x256xf32> -> vector<8x256xf32>
    %12 = arith.truncf %11 : vector<8x256xf32> to vector<8x256xbf16>
    %c0_9 = arith.constant 0 : index
    %c0_10 = arith.constant 0 : index
    %13 = vector.load %arg5[%c0_9, %c0_10] : memref<1x256xbf16, #tpu.memory_space<vmem>>, vector<1x256xbf16>
    %14 = vector.broadcast %13 : vector<1x256xbf16> to vector<8x256xbf16>
    %15 = arith.addf %12, %14 : vector<8x256xbf16>
    %cst_11 = arith.constant 0.000000e+00 : bf16
    %16 = vector.broadcast %cst_11 : bf16 to vector<8x256xbf16>
    %17 = arith.maximumf %15, %16 : vector<8x256xbf16>
    %c0_12 = arith.constant 0 : index
    %c0_13 = arith.constant 0 : index
    %18 = vector.load %arg6[%c0_12, %c0_13] : memref<256x16xbf16, #tpu.memory_space<vmem>>, vector<256x16xbf16>
    %cst_14 = arith.constant dense<0.000000e+00> : vector<8x16xf32>
    %19 = tpu.matmul %17, %18, %cst_14 {dimension_numbers = #tpu.dot_dimension_numbers<[1], [0], [0], [1], [0, 0, 1, 1], [], []>} : vector<8x256xbf16>, vector<256x16xbf16>, vector<8x16xf32> -> vector<8x16xf32>
    %c0_15 = arith.constant 0 : index
    %c0_16 = arith.constant 0 : index
    %20 = vector.load %arg7[%c0_15, %c0_16] : memref<1x16xf32, #tpu.memory_space<vmem>>, vector<1x16xf32>
    %21 = vector.broadcast %20 : vector<1x16xf32> to vector<8x16xf32>
    %22 = arith.addf %19, %21 : vector<8x16xf32>
    %23 = math.tanh %22 : vector<8x16xf32>
    %c0_17 = arith.constant 0 : index
    %c0_18 = arith.constant 0 : index
    %24 = vector.load %arg8[%c0_17, %c0_18] : memref<8x16xf32, #tpu.memory_space<vmem>>, vector<8x16xf32>
    tpu.vector_store %arg8[%c0_17, %c0_18], %23 {strides = array<i32>} : memref<8x16xf32, #tpu.memory_space<vmem>>, vector<8x16xf32>,
    return
  }
  func.func @transform_0(%arg0: i32) -> (i32, i32) {
    %c0_i32 = arith.constant 0 : i32
    %c0_i32_0 = arith.constant 0 : i32
    return %arg0, %c0_i32 : i32, i32
  }
  func.func @transform_1(%arg0: i32) -> (i32, i32) {
    %c0_i32 = arith.constant 0 : i32
    %c0_i32_0 = arith.constant 0 : i32
    %c0_i32_1 = arith.constant 0 : i32
    return %c0_i32, %c0_i32_0 : i32, i32
  }
  func.func @transform_2(%arg0: i32) -> (i32, i32) {
    %c0_i32 = arith.constant 0 : i32
    %c0_i32_0 = arith.constant 0 : i32
    %c0_i32_1 = arith.constant 0 : i32
    return %c0_i32, %c0_i32_0 : i32, i32
  }
  func.func @transform_3(%arg0: i32) -> (i32, i32) {
    %c0_i32 = arith.constant 0 : i32
    %c0_i32_0 = arith.constant 0 : i32
    %c0_i32_1 = arith.constant 0 : i32
    return %c0_i32, %c0_i32_0 : i32, i32
  }
  func.func @transform_4(%arg0: i32) -> (i32, i32) {
    %c0_i32 = arith.constant 0 : i32
    %c0_i32_0 = arith.constant 0 : i32
    %c0_i32_1 = arith.constant 0 : i32
    return %c0_i32, %c0_i32_0 : i32, i32
  }
  func.func @transform_5(%arg0: i32) -> (i32, i32) {
    %c0_i32 = arith.constant 0 : i32
    %c0_i32_0 = arith.constant 0 : i32
    %c0_i32_1 = arith.constant 0 : i32
    return %c0_i32, %c0_i32_0 : i32, i32
  }
  func.func @transform_6(%arg0: i32) -> (i32, i32) {
    %c0_i32 = arith.constant 0 : i32
    %c0_i32_0 = arith.constant 0 : i32
    %c0_i32_1 = arith.constant 0 : i32
    return %c0_i32, %c0_i32_0 : i32, i32
  }
  func.func @transform_7(%arg0: i32) -> (i32, i32) {
    %c0_i32 = arith.constant 0 : i32
    %c0_i32_0 = arith.constant 0 : i32
    return %arg0, %c0_i32 : i32, i32
  }
}

</mosaic_0001>

<llo_original>
// kernel: tpu_custom_call.1
$region0: #{tpu_custom_call.1}
  #allocation0 [shape = 'u32[]', space=smem, size = 0x4, offset = 0x4, fixed_abs, tag = 'smem constant byte address 0x4 - core index']
  #allocation1 [shape = 'u32[144,128]{1,0:T(1,128)}', space=vmem, size = 0x12000, scoped, tag = 'internal scratch']
  %s0 = inlined_call_operand.hbm [shape: f32[8,32], index: 0, kind: input, shape index: {}]
  %s1 = inlined_call_operand.vmem [shape: bf16[32,128], index: 1, kind: input, shape index: {}]
  %s2 = inlined_call_operand.hbm [shape: bf16[1,128], index: 2, kind: input, shape index: {}]
  %s3 = inlined_call_operand.vmem [shape: bf16[128,256], index: 3, kind: input, shape index: {}]
  %s4 = inlined_call_operand.vmem [shape: bf16[1,256], index: 4, kind: input, shape index: {}]
  %s5 = inlined_call_operand.vmem [shape: bf16[256,16], index: 5, kind: input, shape index: {}]
  %s6 = inlined_call_operand.vmem [shape: f32[1,16], index: 6, kind: input, shape index: {}]
  %s7 = inlined_call_operand.hbm [shape: f32[8,16], index: 7, kind: output, shape index: {}]
  %s8 = sld [smem:[#allocation0]]
  $region46: #{tpu_custom_call.1} parent=0
    _
  %s10 = ssub.s32 1, %s8
  %s11 = scalar_select 0, %s10, %s8
  $region1: #{tpu_custom_call.1} parent=0
    #allocation2 [shape = 'u8[4096]{0}', space=vmem, size = 0x1000, scoped, tag = 'input window, operand 0, single buffered']
    #allocation3 [shape = 's32[1]{0}', space=sflag, size = 0x4, scoped, tag = 'scoped memory for tpu_custom_call.1']
    #allocation4 [shape = 's32[1]{0}', space=sflag, size = 0x4, scoped, tag = 'scoped memory for tpu_custom_call.1']
    #allocation5 [shape = 'u8[512]{0}', space=vmem, size = 0x400, scoped, tag = 'input window, operand 2, single buffered']
    #allocation6 [shape = 's32[1]{0}', space=sflag, size = 0x4, scoped, tag = 'scoped memory for tpu_custom_call.1']
    #allocation7 [shape = 'u8[4096]{0}', space=vmem, size = 0x1000, scoped, tag = 'output window, operand 0, single buffered']
    %12 = vsyncpa [#allocation3], 0
    %13 = vsyncpa [#allocation6], 0
    %14 = vsyncpa [#allocation4], 0
    // Predicated region
    $region2: #{tpu_custom_call.1} parent=1 // pred_check
      _
    $region3: #{tpu_custom_call.1} parent=1 // pred_check_branch
      %16 = sbr.rel (0) target = $region5
    $region4: #{tpu_custom_call.1} parent=1 // pred_region
      %s18 = ssub.s32 128, 128
      %19 = vsyncadd [#allocation3], %s18
      %s21 = sshll.u32 [#allocation2], 4
      %s22 = int_to_ptr.vmem [resolvable:$true] %s21
      %24 = dma.hbm_to_vmem [thread:$0]  %s0, 128, %s22, [#allocation3]
    $region5: #{tpu_custom_call.1} parent=1 // pred_fallthru
      _
    // Predicated region
    $region6: #{tpu_custom_call.1} parent=1 // pred_check
      _
    $region7: #{tpu_custom_call.1} parent=1 // pred_check_branch
      %26 = sbr.rel (0) target = $region9
    $region8: #{tpu_custom_call.1} parent=1 // pred_region
      _
    $region9: #{tpu_custom_call.1} parent=1 // pred_fallthru
      _
    // Predicated region
    $region10: #{tpu_custom_call.1} parent=1 // pred_check
      _
    $region11: #{tpu_custom_call.1} parent=1 // pred_check_branch
      %28 = sbr.rel (0) target = $region13
    $region12: #{tpu_custom_call.1} parent=1 // pred_region
      %s30 = ssub.s32 16, 16
      %31 = vsyncadd [#allocation6], %s30
      %s33 = sshll.u32 [#allocation5], 4
      %s34 = int_to_ptr.vmem [resolvable:$true] %s33
      %36 = dma.hbm_to_vmem [thread:$0]  %s2, 16, %s34, [#allocation6]
    $region13: #{tpu_custom_call.1} parent=1 // pred_fallthru
      _
    // Predicated region
    $region14: #{tpu_custom_call.1} parent=1 // pred_check
      _
    $region15: #{tpu_custom_call.1} parent=1 // pred_check_branch
      %38 = sbr.rel (0) target = $region17
    $region16: #{tpu_custom_call.1} parent=1 // pred_region
      _
    $region17: #{tpu_custom_call.1} parent=1 // pred_fallthru
      _
    // Predicated region
    $region18: #{tpu_custom_call.1} parent=1 // pred_check
      _
    $region19: #{tpu_custom_call.1} parent=1 // pred_check_branch
      %40 = sbr.rel (0) target = $region21
    $region20: #{tpu_custom_call.1} parent=1 // pred_region
      _
    $region21: #{tpu_custom_call.1} parent=1 // pred_fallthru
      _
    // Predicated region
    $region22: #{tpu_custom_call.1} parent=1 // pred_check
      _
    $region23: #{tpu_custom_call.1} parent=1 // pred_check_branch
      %42 = sbr.rel (0) target = $region25
    $region24: #{tpu_custom_call.1} parent=1 // pred_region
      _
    $region25: #{tpu_custom_call.1} parent=1 // pred_fallthru
      _
    // Predicated region
    $region26: #{tpu_custom_call.1} parent=1 // pred_check
      _
    $region27: #{tpu_custom_call.1} parent=1 // pred_check_branch
      %44 = sbr.rel (0) target = $region29
    $region28: #{tpu_custom_call.1} parent=1 // pred_region
      _
    $region29: #{tpu_custom_call.1} parent=1 // pred_fallthru
      _
    // Predicated region
    $region30: #{tpu_custom_call.1} parent=1 // pred_check
      _
    $region31: #{tpu_custom_call.1} parent=1 // pred_check_branch
      %46 = sbr.rel (0) target = $region33
    $region32: #{tpu_custom_call.1} parent=1 // pred_region
      %47 = dma.done [#allocation3], 128
    $region33: #{tpu_custom_call.1} parent=1 // pred_fallthru
      _
    // Predicated region
    $region34: #{tpu_custom_call.1} parent=1 // pred_check
      _
    $region35: #{tpu_custom_call.1} parent=1 // pred_check_branch
      %49 = sbr.rel (0) target = $region37
    $region36: #{tpu_custom_call.1} parent=1 // pred_region
      %50 = dma.done [#allocation6], 16
    $region37: #{tpu_custom_call.1} parent=1 // pred_fallthru
      _
    %v52 = vld [vmem:[#allocation2] sm:$0xff]
    %v53 = vpack.c.bf16 %v52, %v52
    %v54 = vld [vmem:[%s1] sm:$0xf]
    %v55 = vld [vmem:[%s1 + $0x4] sm:$0xf]
    %v56 = vld [vmem:[%s1 + $0x8] sm:$0xf]
    %v57 = vld [vmem:[%s1 + $0xc] sm:$0xf]
    %v62 = vunpack.c.l.b16 %v54
    %v63 = vunpack.c.l.b16 %v55
    %v64 = vunpack.c.l.b16 %v56
    %v65 = vunpack.c.l.b16 %v57
    %v66 = vpack.c.b16 %v63, %v62
    %v67 = vpack.c.b16 %v65, %v64
    %vm70 = vcmask 261120
    %v72 = vsel %vm70, %v53, 0
    %74 = vmatprep.subr.bf16.mxu0 0
    %75 = vmatpush1.bf16.msra.mxu0 %v66
    %76 = vmatprep.subr.bf16.mxu0 0
    %77 = vmatpush1.bf16.msra.mxu0 %v67
    %78 = vmatprep.subr.bf16.mxu0 0
    %79 = vmatpush1.bf16.msra.mxu0 0
    %80 = vmatprep.subr.bf16.mxu0 0
    %81 = vmatpush1.bf16.msra.mxu0 0
    %82 = vmatprep.subr.bf16.mxu0 0
    %83 = vmatpush1.bf16.msra.mxu0 0
    %84 = vmatprep.subr.bf16.mxu0 0
    %85 = vmatpush1.bf16.msra.mxu0 0
    %86 = vmatprep.subr.bf16.mxu0 0
    %87 = vmatpush1.bf16.msra.mxu0 0
    %88 = vmatprep.subr.bf16.mxu0 0
    %89 = vmatpush1.bf16.msra.mxu0 0
    %90 = vmatprep.subr.bf16.mxu0 0
    %91 = vmatpush1.bf16.msra.mxu0 0
    %92 = vmatprep.subr.bf16.mxu0 0
    %93 = vmatpush1.bf16.msra.mxu0 0
    %94 = vmatprep.subr.bf16.mxu0 0
    %95 = vmatpush1.bf16.msra.mxu0 0
    %96 = vmatprep.subr.bf16.mxu0 0
    %97 = vmatpush1.bf16.msra.mxu0 0
    %98 = vmatprep.subr.bf16.mxu0 0
    %99 = vmatpush1.bf16.msra.mxu0 0
    %100 = vmatprep.subr.bf16.mxu0 0
    %101 = vmatpush1.bf16.msra.mxu0 0
    %102 = vmatprep.subr.bf16.mxu0 0
    %103 = vmatpush1.bf16.msra.mxu0 0
    %104 = vmatprep.subr.bf16.mxu0 0
    %105 = vmatpush1.bf16.msra.mxu0 0
    %106 = vmatprep.mubr.bf16.mxu0 0
    %107 = vmatmul.mubr.bf16.gmra.mrb[0].mxu0 %v72
    %v108 = vpop.f32.mrb[0].mxu0
    %v109 = vadd.f32 0.0, %v108
    %v110 = vpop.f32.mrb[0].mxu0
    %v111 = vpop.f32.mrb[0].mxu0
    %v112 = vpop.f32.mrb[0].mxu0
    %113 = vdwg.mxu0
    %v114 = vpack.c.bf16 %v109, %v109
    %v115 = vld [vmem:[#allocation5] sm:$0x1]
    %v117 = vpack.i.b16 %v115, %v115
    %v119 = vlaneseq
    %v120 = vshrl.u32 %v119, 7
    %v121 = vsub.s32 0, %v120
    %v122 = vrot.slane %v117, %v121
    %v123 = vadd.bf16 %v114, %v122
    %v124 = vmax.bf16 %v123, 0
    %v125 = vld [vmem:[%s3] sm:$0xff]
    %v126 = vld [vmem:[%s3 + $0x8] sm:$0xff]
    %v127 = vld [vmem:[%s3 + $0x10] sm:$0xff]
    %v128 = vld [vmem:[%s3 + $0x18] sm:$0xff]
    %v129 = vld [vmem:[%s3 + $0x20] sm:$0xff]
    %v130 = vld [vmem:[%s3 + $0x28] sm:$0xff]
    %v131 = vld [vmem:[%s3 + $0x30] sm:$0xff]
    %v132 = vld [vmem:[%s3 + $0x38] sm:$0xff]
    %v133 = vld [vmem:[%s3 + $0x40] sm:$0xff]
    %v134 = vld [vmem:[%s3 + $0x48] sm:$0xff]
    %v135 = vld [vmem:[%s3 + $0x50] sm:$0xff]
    %v136 = vld [vmem:[%s3 + $0x58] sm:$0xff]
    %v137 = vld [vmem:[%s3 + $0x60] sm:$0xff]
    %v138 = vld [vmem:[%s3 + $0x68] sm:$0xff]
    %v139 = vld [vmem:[%s3 + $0x70] sm:$0xff]
    %v140 = vld [vmem:[%s3 + $0x78] sm:$0xff]
    %v157 = vunpack.c.l.b16 %v125
    %v158 = vunpack.c.h.b16 %v125
    %v159 = vunpack.c.l.b16 %v126
    %v160 = vunpack.c.h.b16 %v126
    %v161 = vunpack.c.l.b16 %v127
    %v162 = vunpack.c.h.b16 %v127
    %v163 = vunpack.c.l.b16 %v128
    %v164 = vunpack.c.h.b16 %v128
    %v165 = vunpack.c.l.b16 %v129
    %v166 = vunpack.c.h.b16 %v129
    %v167 = vunpack.c.l.b16 %v130
    %v168 = vunpack.c.h.b16 %v130
    %v169 = vunpack.c.l.b16 %v131
    %v170 = vunpack.c.h.b16 %v131
    %v171 = vunpack.c.l.b16 %v132
    %v172 = vunpack.c.h.b16 %v132
    %v173 = vunpack.c.l.b16 %v133
    %v174 = vunpack.c.h.b16 %v133
    %v175 = vunpack.c.l.b16 %v134
    %v176 = vunpack.c.h.b16 %v134
    %v177 = vunpack.c.l.b16 %v135
    %v178 = vunpack.c.h.b16 %v135
    %v179 = vunpack.c.l.b16 %v136
    %v180 = vunpack.c.h.b16 %v136
    %v181 = vunpack.c.l.b16 %v137
    %v182 = vunpack.c.h.b16 %v137
    %v183 = vunpack.c.l.b16 %v138
    %v184 = vunpack.c.h.b16 %v138
    %v185 = vunpack.c.l.b16 %v139
    %v186 = vunpack.c.h.b16 %v139
    %v187 = vunpack.c.l.b16 %v140
    %v188 = vunpack.c.h.b16 %v140
    %v189 = vpack.c.b16 %v159, %v157
    %v190 = vpack.c.b16 %v160, %v158
    %v191 = vpack.c.b16 %v163, %v161
    %v192 = vpack.c.b16 %v164, %v162
    %v193 = vpack.c.b16 %v167, %v165
    %v194 = vpack.c.b16 %v168, %v166
    %v195 = vpack.c.b16 %v171, %v169
    %v196 = vpack.c.b16 %v172, %v170
    %v197 = vpack.c.b16 %v175, %v173
    %v198 = vpack.c.b16 %v176, %v174
    %v199 = vpack.c.b16 %v179, %v177
    %v200 = vpack.c.b16 %v180, %v178
    %v201 = vpack.c.b16 %v183, %v181
    %v202 = vpack.c.b16 %v184, %v182
    %v203 = vpack.c.b16 %v187, %v185
    %v204 = vpack.c.b16 %v188, %v186
    %221 = vmatprep.subr.bf16.mxu0 %v190
    %222 = vmatpush1.bf16.msra.mxu0 %v189
    %223 = vmatprep.subr.bf16.mxu0 %v192
    %224 = vmatpush1.bf16.msra.mxu0 %v191
    %225 = vmatprep.subr.bf16.mxu0 %v194
    %226 = vmatpush1.bf16.msra.mxu0 %v193
    %227 = vmatprep.subr.bf16.mxu0 %v196
    %228 = vmatpush1.bf16.msra.mxu0 %v195
    %229 = vmatprep.subr.bf16.mxu0 %v198
    %230 = vmatpush1.bf16.msra.mxu0 %v197
    %231 = vmatprep.subr.bf16.mxu0 %v200
    %232 = vmatpush1.bf16.msra.mxu0 %v199
    %233 = vmatprep.subr.bf16.mxu0 %v202
    %234 = vmatpush1.bf16.msra.mxu0 %v201
    %235 = vmatprep.subr.bf16.mxu0 %v204
    %236 = vmatpush1.bf16.msra.mxu0 %v203
    %237 = vmatprep.subr.bf16.mxu0 0
    %238 = vmatpush1.bf16.msra.mxu0 0
    %239 = vmatprep.subr.bf16.mxu0 0
    %240 = vmatpush1.bf16.msra.mxu0 0
    %241 = vmatprep.subr.bf16.mxu0 0
    %242 = vmatpush1.bf16.msra.mxu0 0
    %243 = vmatprep.subr.bf16.mxu0 0
    %244 = vmatpush1.bf16.msra.mxu0 0
    %245 = vmatprep.subr.bf16.mxu0 0
    %246 = vmatpush1.bf16.msra.mxu0 0
    %247 = vmatprep.subr.bf16.mxu0 0
    %248 = vmatpush1.bf16.msra.mxu0 0
    %249 = vmatprep.subr.bf16.mxu0 0
    %250 = vmatpush1.bf16.msra.mxu0 0
    %251 = vmatprep.subr.bf16.mxu0 0
    %252 = vmatpush1.bf16.msra.mxu0 0
    %253 = vmatprep.mubr.bf16.mxu0 0
    %254 = vmatmul.mubr.bf16.gmra.mrb[0].mxu0 %v124
    %v255 = vpop.f32.mrb[0].mxu0
    %v256 = vadd.f32 0.0, %v255
    %v257 = vpop.f32.mrb[0].mxu0
    %v258 = vadd.f32 0.0, %v257
    %v259 = vpop.f32.mrb[0].mxu0
    %v260 = vpop.f32.mrb[0].mxu0
    %261 = vdwg.mxu0
    %v262 = vpack.c.bf16 %v256, %v256
    %v263 = vpack.c.bf16 %v258, %v258
    %v264 = vld [vmem:[%s4] sm:$0x3]
    %v267 = vunpack.c.l.s4 1966171168
    %v268 = vunpack.c.0.s8 %v267
    %v269 = vlaneseq
    %v270 = vshrl.u32 %v269, 7
    %v271 = vsub.s32 %v268, %v270
    %v272 = vrot.slane %v264, %v271
    %v273 = vcombine.high %v272, %v272
    %v275 = vunpack.c.l.s4 1966171168
    %v276 = vunpack.c.0.s8 %v275
    %v277 = vlaneseq
    %v278 = vshrl.u32 %v277, 7
    %v279 = vsub.s32 %v276, %v278
    %v280 = vrot.slane %v272, %v279
    %v282 = vunpack.c.l.s4 1966171168
    %v283 = vunpack.c.0.s8 %v282
    %v284 = vlaneseq
    %v285 = vshrl.u32 %v284, 7
    %v286 = vsub.s32 %v283, %v285
    %v287 = vrot.slane %v273, %v286
    %v289 = vpack.i.b16 %v280, %v280
    %v291 = vlaneseq
    %v292 = vshrl.u32 %v291, 7
    %v293 = vsub.s32 0, %v292
    %v294 = vrot.slane %v289, %v293
    %v296 = vpack.i.b16 %v287, %v287
    %v298 = vlaneseq
    %v299 = vshrl.u32 %v298, 7
    %v300 = vsub.s32 0, %v299
    %v301 = vrot.slane %v296, %v300
    %v302 = vadd.bf16 %v262, %v294
    %v303 = vadd.bf16 %v263, %v301
    %v304 = vmax.bf16 %v302, 0
    %v305 = vmax.bf16 %v303, 0
    %v306 = vld [vmem:[%s5] sm:$0xf]
    %v307 = vld [vmem:[%s5 + $0x4] sm:$0xf]
    %v308 = vld [vmem:[%s5 + $0x8] sm:$0xf]
    %v309 = vld [vmem:[%s5 + $0xc] sm:$0xf]
    %v310 = vld [vmem:[%s5 + $0x10] sm:$0xf]
    %v311 = vld [vmem:[%s5 + $0x14] sm:$0xf]
    %v312 = vld [vmem:[%s5 + $0x18] sm:$0xf]
    %v313 = vld [vmem:[%s5 + $0x1c] sm:$0xf]
    %v314 = vld [vmem:[%s5 + $0x20] sm:$0xf]
    %v315 = vld [vmem:[%s5 + $0x24] sm:$0xf]
    %v316 = vld [vmem:[%s5 + $0x28] sm:$0xf]
    %v317 = vld [vmem:[%s5 + $0x2c] sm:$0xf]
    %v318 = vld [vmem:[%s5 + $0x30] sm:$0xf]
    %v319 = vld [vmem:[%s5 + $0x34] sm:$0xf]
    %v320 = vld [vmem:[%s5 + $0x38] sm:$0xf]
    %v321 = vld [vmem:[%s5 + $0x3c] sm:$0xf]
    %v322 = vld [vmem:[%s5 + $0x40] sm:$0xf]
    %v323 = vld [vmem:[%s5 + $0x44] sm:$0xf]
    %v324 = vld [vmem:[%s5 + $0x48] sm:$0xf]
    %v325 = vld [vmem:[%s5 + $0x4c] sm:$0xf]
    %v326 = vld [vmem:[%s5 + $0x50] sm:$0xf]
    %v327 = vld [vmem:[%s5 + $0x54] sm:$0xf]
    %v328 = vld [vmem:[%s5 + $0x58] sm:$0xf]
    %v329 = vld [vmem:[%s5 + $0x5c] sm:$0xf]
    %v330 = vld [vmem:[%s5 + $0x60] sm:$0xf]
    %v331 = vld [vmem:[%s5 + $0x64] sm:$0xf]
    %v332 = vld [vmem:[%s5 + $0x68] sm:$0xf]
    %v333 = vld [vmem:[%s5 + $0x6c] sm:$0xf]
    %v334 = vld [vmem:[%s5 + $0x70] sm:$0xf]
    %v335 = vld [vmem:[%s5 + $0x74] sm:$0xf]
    %v336 = vld [vmem:[%s5 + $0x78] sm:$0xf]
    %v337 = vld [vmem:[%s5 + $0x7c] sm:$0xf]
    %v338 = vld [vmem:[%s6] sm:$0x1]
    %v340 = vlaneseq
    %v341 = vshrl.u32 %v340, 7
    %v342 = vsub.s32 0, %v341
    %v343 = vrot.slane %v338, %v342
    %v377 = vunpack.c.l.b16 %v306
    %v378 = vunpack.c.l.b16 %v307
    %v379 = vunpack.c.l.b16 %v308
    %v380 = vunpack.c.l.b16 %v309
    %v381 = vunpack.c.l.b16 %v310
    %v382 = vunpack.c.l.b16 %v311
    %v383 = vunpack.c.l.b16 %v312
    %v384 = vunpack.c.l.b16 %v313
    %v385 = vunpack.c.l.b16 %v314
    %v386 = vunpack.c.l.b16 %v315
    %v387 = vunpack.c.l.b16 %v316
    %v388 = vunpack.c.l.b16 %v317
    %v389 = vunpack.c.l.b16 %v318
    %v390 = vunpack.c.l.b16 %v319
    %v391 = vunpack.c.l.b16 %v320
    %v392 = vunpack.c.l.b16 %v321
    %v393 = vunpack.c.l.b16 %v322
    %v394 = vunpack.c.l.b16 %v323
    %v395 = vunpack.c.l.b16 %v324
    %v396 = vunpack.c.l.b16 %v325
    %v397 = vunpack.c.l.b16 %v326
    %v398 = vunpack.c.l.b16 %v327
    %v399 = vunpack.c.l.b16 %v328
    %v400 = vunpack.c.l.b16 %v329
    %v401 = vunpack.c.l.b16 %v330
    %v402 = vunpack.c.l.b16 %v331
    %v403 = vunpack.c.l.b16 %v332
    %v404 = vunpack.c.l.b16 %v333
    %v405 = vunpack.c.l.b16 %v334
    %v406 = vunpack.c.l.b16 %v335
    %v407 = vunpack.c.l.b16 %v336
    %v408 = vunpack.c.l.b16 %v337
    %v409 = vpack.c.b16 %v378, %v377
    %v410 = vpack.c.b16 %v380, %v379
    %v411 = vpack.c.b16 %v382, %v381
    %v412 = vpack.c.b16 %v384, %v383
    %v413 = vpack.c.b16 %v386, %v385
    %v414 = vpack.c.b16 %v388, %v387
    %v415 = vpack.c.b16 %v390, %v389
    %v416 = vpack.c.b16 %v392, %v391
    %v417 = vpack.c.b16 %v394, %v393
    %v418 = vpack.c.b16 %v396, %v395
    %v419 = vpack.c.b16 %v398, %v397
    %v420 = vpack.c.b16 %v400, %v399
    %v421 = vpack.c.b16 %v402, %v401
    %v422 = vpack.c.b16 %v404, %v403
    %v423 = vpack.c.b16 %v406, %v405
    %v424 = vpack.c.b16 %v408, %v407
    %441 = vmatprep.subr.bf16.mxu0 0
    %442 = vmatpush1.bf16.msra.mxu0 %v409
    %443 = vmatprep.subr.bf16.mxu0 0
    %444 = vmatpush1.bf16.msra.mxu0 %v410
    %445 = vmatprep.subr.bf16.mxu0 0
    %446 = vmatpush1.bf16.msra.mxu0 %v411
    %447 = vmatprep.subr.bf16.mxu0 0
    %448 = vmatpush1.bf16.msra.mxu0 %v412
    %449 = vmatprep.subr.bf16.mxu0 0
    %450 = vmatpush1.bf16.msra.mxu0 %v413
    %451 = vmatprep.subr.bf16.mxu0 0
    %452 = vmatpush1.bf16.msra.mxu0 %v414
    %453 = vmatprep.subr.bf16.mxu0 0
    %454 = vmatpush1.bf16.msra.mxu0 %v415
    %455 = vmatprep.subr.bf16.mxu0 0
    %456 = vmatpush1.bf16.msra.mxu0 %v416
    %457 = vmatprep.subr.bf16.mxu0 0
    %458 = vmatpush1.bf16.msra.mxu0 %v417
    %459 = vmatprep.subr.bf16.mxu0 0
    %460 = vmatpush1.bf16.msra.mxu0 %v418
    %461 = vmatprep.subr.bf16.mxu0 0
    %462 = vmatpush1.bf16.msra.mxu0 %v419
    %463 = vmatprep.subr.bf16.mxu0 0
    %464 = vmatpush1.bf16.msra.mxu0 %v420
    %465 = vmatprep.subr.bf16.mxu0 0
    %466 = vmatpush1.bf16.msra.mxu0 %v421
    %467 = vmatprep.subr.bf16.mxu0 0
    %468 = vmatpush1.bf16.msra.mxu0 %v422
    %469 = vmatprep.subr.bf16.mxu0 0
    %470 = vmatpush1.bf16.msra.mxu0 %v423
    %471 = vmatprep.subr.bf16.mxu0 0
    %472 = vmatpush1.bf16.msra.mxu0 %v424
    %473 = vmatprep.mubr.bf16.mxu0 %v305
    %474 = vmatmul.mubr.bf16.gmra.mrb[0].mxu0 %v304
    %v475 = vpop.f32.mrb[0].mxu0
    %v476 = vadd.f32 %v343, %v475
    %v477 = vpop.f32.mrb[0].mxu0
    %v478 = vpop.f32.mrb[0].mxu0
    %v479 = vpop.f32.mrb[0].mxu0
    %480 = vdwg.mxu0
    %v481 = vtanh.pop %v476
    %vm482 = vcmask 130048
    %483 = vst.msk [vmem:[#allocation7] sm:$0xff] %vm482, %v481
    // Predicated region
    $region38: #{tpu_custom_call.1} parent=1 // pred_check
      _
    $region39: #{tpu_custom_call.1} parent=1 // pred_check_branch
      %485 = sbr.rel (0) target = $region41
    $region40: #{tpu_custom_call.1} parent=1 // pred_region
      %s487 = ssub.s32 128, 128
      %488 = vsyncadd [#allocation4], %s487
      %s490 = sshll.u32 [#allocation7], 4
      %s491 = int_to_ptr.vmem [resolvable:$true] %s490
      %493 = dma.vmem_to_hbm [thread:$0]  %s491, 128, %s7, [#allocation4]
    $region41: #{tpu_custom_call.1} parent=1 // pred_fallthru
      _
    // Predicated region
    $region42: #{tpu_custom_call.1} parent=1 // pred_check
      _
    $region43: #{tpu_custom_call.1} parent=1 // pred_check_branch
      %495 = sbr.rel (0) target = $region45
    $region44: #{tpu_custom_call.1} parent=1 // pred_region
      %496 = dma.done [#allocation4], 128
    $region45: #{tpu_custom_call.1} parent=1 // pred_fallthru
      _
    %497 = vsyncpa [#allocation3], 1
    %498 = vsyncpa [#allocation6], 1
    %499 = vsyncpa [#allocation4], 1

</llo_original>
